<compile_context>
chip_gen: v6e
topology: v6e:2x2x1
jax: 0.10.0
libtpu: 0.0.40
codegen_flags: <defaults>
</compile_context>

<pallas_src>
import jax
import jax.numpy as jnp
from jax.experimental import pallas as pl
from jax.experimental.pallas import tpu as pltpu

_LANES = 128
# ~4 MiB per block buffer.  in_spec + out_spec, each double-buffered by the
# Pallas pipeline => peak ~4 * block bytes = 16 MiB of VMEM, comfortably under
# the explicit 32 MiB limit below on v5e, v6e and v7x.
_TARGET_BLOCK_BYTES = 4 << 20
_VMEM_LIMIT_BYTES = 32 << 20


def _identity_kernel(x_ref, o_ref):
    # The entire forward pass of Identity: copy the current tile.
    o_ref[...] = x_ref[...]


def _min_sublane(dtype) -> int:
    # Minimum second-to-last block dim for this dtype: 8 for 4-byte,
    # 16 for 2-byte, 32 for 1-byte elements (narrow dtypes pack along sublanes).
    itemsize = jnp.dtype(dtype).itemsize
    return max(8, 32 // max(itemsize, 1))


def _copy_call(x_view, block_shape, grid, index_map):
    itemsize = jnp.dtype(x_view.dtype).itemsize
    return pl.pallas_call(
        _identity_kernel,
        out_shape=jax.ShapeDtypeStruct(x_view.shape, x_view.dtype),
        grid=grid,
        in_specs=[pl.BlockSpec(block_shape, index_map)],
        out_specs=pl.BlockSpec(block_shape, index_map),
        input_output_aliases={0: 0},
        compiler_params=pltpu.CompilerParams(
            dimension_semantics=("parallel",),
            vmem_limit_bytes=_VMEM_LIMIT_BYTES,
        ),
        cost_estimate=pl.CostEstimate(
            flops=0,
            transcendentals=0,
            bytes_accessed=2 * x_view.size * itemsize,
        ),
    )(x_view)


def identity(x, *, materialize: bool = True):
    """Identity forward: returns x.

    materialize=False returns x directly with no kernel launch (the true
    optimum — Identity requires no compute).  materialize=True runs a Pallas
    copy so a freshly materialized buffer is produced; with
    input_output_aliases={0: 0} this copy becomes (nearly) free inside a jit
    ONLY if the caller donates x (jax.jit(..., donate_argnums=...)).  Without
    donation XLA inserts a defensive copy of x, doubling HBM traffic.
    """
    if not materialize:
        return x

    if x.size == 0:
        return x  # nothing to copy; avoid a zero-sized grid

    orig_shape = x.shape
    itemsize = jnp.dtype(x.dtype).itemsize
    total = x.size

    # Metadata-only flatten for contiguous default-layout arrays: collapses
    # small trailing dims (e.g. a last dim of 16) into a lane-dense view.
    x_flat = x.reshape(-1)

    if total % _LANES == 0:
        # Lane-dense 2-D view: last dim exactly 128 lanes -> full vregs,
        # unmasked vst stores, contiguous DMA rows.
        rows = total // _LANES
        x2 = x_flat.reshape(rows, _LANES)
        row_bytes = _LANES * itemsize
        block_rows = max(1, _TARGET_BLOCK_BYTES // row_bytes)
        if block_rows >= rows:
            block_rows = rows  # single block == full dim: always legal
        else:
            sub = _min_sublane(x.dtype)
            block_rows = max(sub, (block_rows // sub) * sub)
        grid = (pl.cdiv(rows, block_rows),)
        out = _copy_call(x2, (block_rows, _LANES), grid, lambda i: (i, 0))
    else:
        # Ragged element count: 1-D view.  Blocks are a multiple of 128
        # elements (or the full array when it is smaller); Pallas masks the
        # ragged tail block itself.
        block_elems = max(
            _LANES, (_TARGET_BLOCK_BYTES // itemsize) // _LANES * _LANES
        )
        if block_elems >= total:
            block_elems = total
        grid = (pl.cdiv(total, block_elems),)
        out = _copy_call(x_flat, (block_elems,), grid, lambda i: (i,))

    return out.reshape(orig_shape)


if __name__ == "__main__":
    key = jax.random.PRNGKey(0)

    # Module-consistent shape: batch=2, channels=4, spatial=16x16.
    x = jax.random.normal(key, (2, 4, 16, 16), dtype=jnp.float32)
    y = identity(x)
    jax.block_until_ready(y)
    assert y.shape == x.shape, f"shape mismatch: {y.shape} vs {x.shape}"
    assert y.dtype == x.dtype, f"dtype mismatch: {y.dtype} vs {x.dtype}"
    assert bool(jnp.array_equal(y, x)), "identity output differs from input"

    # Ragged / narrow-dtype path (element count not a multiple of 128).
    x2 = jax.random.normal(key, (3, 5, 7), dtype=jnp.bfloat16)
    y2 = identity(x2)
    jax.block_until_ready(y2)
    assert y2.shape == x2.shape and y2.dtype == x2.dtype
    assert bool(jnp.array_equal(y2, x2)), "ragged identity output differs"

    # Zero-compute fast path.
    y3 = identity(x, materialize=False)
    assert y3 is x

    print("KERNEL_OK")
</pallas_src>

<mosaic_0001>
module attributes {stable_mosaic.version = 11 : i64} {
  func.func @_identity_kernel(%arg0: i32, %arg1: memref<16x128xf32, #tpu.memory_space<vmem>>, %arg2: memref<16x128xf32, #tpu.memory_space<vmem>>) attributes {dimension_semantics = [#tpu.dimension_semantics<parallel>], iteration_bounds = array<i64: 1>, scalar_prefetch = 0 : i64, scratch_operands = 0 : i64, tpu.core_type = #tpu.core_type<tc>, window_params = [{transform_indices = @transform_0, window_bounds = array<i64: 16, 128>}, {transform_indices = @transform_1, window_bounds = array<i64: 16, 128>}]} {
    %c0 = arith.constant 0 : index
    %c0_0 = arith.constant 0 : index
    %0 = vector.load %arg1[%c0, %c0_0] : memref<16x128xf32, #tpu.memory_space<vmem>>, vector<16x128xf32>
    %c0_1 = arith.constant 0 : index
    %c0_2 = arith.constant 0 : index
    %1 = vector.load %arg2[%c0_1, %c0_2] : memref<16x128xf32, #tpu.memory_space<vmem>>, vector<16x128xf32>
    tpu.vector_store %arg2[%c0_1, %c0_2], %0 {strides = array<i32>} : memref<16x128xf32, #tpu.memory_space<vmem>>, vector<16x128xf32>,
    return
  }
  func.func @transform_0(%arg0: i32) -> (i32, i32) {
    %c0_i32 = arith.constant 0 : i32
    %c0_i32_0 = arith.constant 0 : i32
    return %arg0, %c0_i32 : i32, i32
  }
  func.func @transform_1(%arg0: i32) -> (i32, i32) {
    %c0_i32 = arith.constant 0 : i32
    %c0_i32_0 = arith.constant 0 : i32
    return %arg0, %c0_i32 : i32, i32
  }
}

</mosaic_0001>

<llo_original>
// kernel: tpu_custom_call.1
$region0: #{tpu_custom_call.1}
  #allocation0 [shape = 'u32[]', space=smem, size = 0x4, offset = 0x4, fixed_abs, tag = 'smem constant byte address 0x4 - core index']
  #allocation1 [shape = 'u32[144,128]{1,0:T(1,128)}', space=vmem, size = 0x12000, scoped, tag = 'internal scratch']
  %s0 = inlined_call_operand.hbm [shape: f32[16,128], index: 0, kind: input, shape index: {}, may-alias: {0,1}]
  %s1 = inlined_call_operand.hbm [shape: f32[16,128], index: 1, kind: output, shape index: {}, may-alias: {0,1}]
  %s2 = sld [smem:[#allocation0]]
  $region18: #{tpu_custom_call.1} parent=0
    _
  %s4 = ssub.s32 1, %s2
  %s5 = scalar_select 0, %s4, %s2
  $region1: #{tpu_custom_call.1} parent=0
    #allocation2 [shape = 'u8[8192]{0}', space=vmem, size = 0x2000, scoped, tag = 'input window, operand 0, single buffered']
    #allocation3 [shape = 's32[1]{0}', space=sflag, size = 0x4, scoped, tag = 'scoped memory for tpu_custom_call.1']
    #allocation4 [shape = 's32[1]{0}', space=sflag, size = 0x4, scoped, tag = 'scoped memory for tpu_custom_call.1']
    #allocation5 [shape = 'u8[8192]{0}', space=vmem, size = 0x2000, scoped, tag = 'output window, operand 0, single buffered']
    %6 = vsyncpa [#allocation3], 0
    %7 = vsyncpa [#allocation4], 0
    // Predicated region
    $region2: #{tpu_custom_call.1} parent=1 // pred_check
      _
    $region3: #{tpu_custom_call.1} parent=1 // pred_check_branch
      %9 = sbr.rel (0) target = $region5
    $region4: #{tpu_custom_call.1} parent=1 // pred_region
      %s11 = ssub.s32 256, 256
      %12 = vsyncadd [#allocation3], %s11
      %s13 = sshll.u32 [#allocation2], 4
      %s14 = int_to_ptr.vmem [resolvable:$true] %s13
      %19 = dma.hbm_to_vmem [thread:$0]  %s0, 256, %s14, [#allocation3], 128, 128, 8
    $region5: #{tpu_custom_call.1} parent=1 // pred_fallthru
      _
    // Predicated region
    $region6: #{tpu_custom_call.1} parent=1 // pred_check
      _
    $region7: #{tpu_custom_call.1} parent=1 // pred_check_branch
      %21 = sbr.rel (0) target = $region9
    $region8: #{tpu_custom_call.1} parent=1 // pred_region
      %22 = dma.done [#allocation3], 256
    $region9: #{tpu_custom_call.1} parent=1 // pred_fallthru
      _
    %v23 = vld [vmem:[#allocation2] sm:$0xff]
    %v24 = vld [vmem:[#allocation2 + $0x8] sm:$0xff]
    %25 = vst [vmem:[#allocation5] sm:$0xff] %v23
    %26 = vst [vmem:[#allocation5 + $0x8] sm:$0xff] %v24
    // Predicated region
    $region10: #{tpu_custom_call.1} parent=1 // pred_check
      _
    $region11: #{tpu_custom_call.1} parent=1 // pred_check_branch
      %28 = sbr.rel (0) target = $region13
    $region12: #{tpu_custom_call.1} parent=1 // pred_region
      %s30 = ssub.s32 256, 256
      %31 = vsyncadd [#allocation4], %s30
      %s32 = sshll.u32 [#allocation5], 4
      %s33 = int_to_ptr.vmem [resolvable:$true] %s32
      %38 = dma.vmem_to_hbm [thread:$0]  %s33, 256, %s1, [#allocation4], 128, 128, 8
    $region13: #{tpu_custom_call.1} parent=1 // pred_fallthru
      _
    // Predicated region
    $region14: #{tpu_custom_call.1} parent=1 // pred_check
      _
    $region15: #{tpu_custom_call.1} parent=1 // pred_check_branch
      %40 = sbr.rel (0) target = $region17
    $region16: #{tpu_custom_call.1} parent=1 // pred_region
      %41 = dma.done [#allocation4], 256
    $region17: #{tpu_custom_call.1} parent=1 // pred_fallthru
      _
    %42 = vsyncpa [#allocation3], 1
    %43 = vsyncpa [#allocation4], 1

</llo_original>
